<compile_context>
chip_gen: v7x
topology: tpu7x:2x2x1
jax: 0.10.0
libtpu: 0.0.40
codegen_flags: <defaults>
</compile_context>

<pallas_src>
import functools
import numpy as np
import jax
import jax.numpy as jnp
from jax import lax
from jax.experimental import pallas as pl
from jax.experimental.pallas import tpu as pltpu


# --------------------------- Pallas kernel -----------------------------------

def _convlstm_fused_kernel(p_ref, w_ref, b_ref, c_ref, out_ref, *, hc):
    """Fused ConvLSTM step for one row-tile.

    gates = patches @ W_fused + bias  -> [tm, 4*hc]   (lanes laid out i|f|c|o)
    then the LSTM element-wise update in f32:
      ci = sigmoid(g_i); cf = sigmoid(g_f); co = sigmoid(g_o)
      c_new = cf * c + ci * tanh(g_c)
      h_new = co * tanh(c_new)
    Output is the lane-packed [tm, 2*hc] slab  [h_new | c_new].
    """
    g = (jnp.dot(p_ref[...], w_ref[...], preferred_element_type=jnp.float32)
         + b_ref[...])
    ci = jax.nn.sigmoid(g[:, 0 * hc:1 * hc])
    cf = jax.nn.sigmoid(g[:, 1 * hc:2 * hc])
    gc = jnp.tanh(g[:, 2 * hc:3 * hc])
    co = jax.nn.sigmoid(g[:, 3 * hc:4 * hc])
    c_new = cf * c_ref[...].astype(jnp.float32) + ci * gc
    h_new = co * jnp.tanh(c_new)
    out_ref[...] = jnp.concatenate([h_new, c_new], axis=-1).astype(out_ref.dtype)


def _pick_tm(n, row_bytes):
    """Largest multiple-of-8 divisor of n that keeps the per-block footprint bounded
    and, when possible, leaves >= 2 grid blocks (v7x second TensorCore)."""
    vmem_cap = max(8, ((12 * 1024 * 1024) // max(row_bytes, 1)) // 8 * 8)
    target = min(max(n // 2, 8), 2048, vmem_cap)
    target = max(8, (target // 8) * 8)
    t = target
    while t >= 8:
        if n % t == 0:
            return t
        t -= 8
    # no multiple-of-8 divisor (n not a multiple of 8) -> row-padding fallback
    return min(target, max(8, ((n + 7) // 8) * 8))


def fused_lstm_gates(patches, w, bias, c, hc):
    """One pallas_call = all 8 circular convs (one fused matmul) + LSTM gate math."""
    N, K = patches.shape
    G = 4 * hc
    # bytes per row across double-buffered operands + f32 gate temp (tm cap heuristic)
    row_bytes = K * patches.dtype.itemsize + hc * 4 + 2 * hc * 4 + G * 4
    tm = _pick_tm(N, row_bytes)
    n_blocks = pl.cdiv(N, tm)
    Np = n_blocks * tm
    if Np != N:                                   # fallback only (N not multiple of 8)
        pad = Np - N
        patches = jnp.pad(patches, ((0, pad), (0, 0)))
        c = jnp.pad(c, ((0, pad), (0, 0)))

    cost = pl.CostEstimate(
        flops=2 * Np * K * G,
        transcendentals=6 * Np * hc,
        bytes_accessed=(Np * K * patches.dtype.itemsize
                        + K * G * w.dtype.itemsize
                        + Np * hc * c.dtype.itemsize
                        + Np * 2 * hc * c.dtype.itemsize),
    )

    packed = pl.pallas_call(
        functools.partial(_convlstm_fused_kernel, hc=hc),
        out_shape=jax.ShapeDtypeStruct((Np, 2 * hc), c.dtype),
        grid_spec=pltpu.PrefetchScalarGridSpec(
            num_scalar_prefetch=0,
            grid=(n_blocks,),
            in_specs=[
                pl.BlockSpec((tm, K), lambda i: (i, 0)),   # fused x|h patches
                pl.BlockSpec((K, G), lambda i: (0, 0)),    # fused gate weights (bf16)
                pl.BlockSpec((1, G), lambda i: (0, 0)),    # fused x-bias (f32)
                pl.BlockSpec((tm, hc), lambda i: (i, 0)),  # previous cell state (f32)
            ],
            out_specs=pl.BlockSpec((tm, 2 * hc), lambda i: (i, 0)),
        ),
        compiler_params=pltpu.CompilerParams(
            dimension_semantics=("parallel",),       # row tiles shard across cores
            vmem_limit_bytes=32 * 1024 * 1024,
        ),
        cost_estimate=cost,
    )(patches, w, bias.reshape(1, G), c)

    if Np != N:
        packed = packed[:N]
    return packed[:, :hc], packed[:, hc:]


# --------------------------- plain-JAX glue ----------------------------------

def im2col_circular(x, kh, kw, stride, padding):
    """Circular-pad + extract conv patches as a single [N, KH*KW*Cin] matrix."""
    B, H, W, Cin = x.shape
    xp = jnp.pad(x, ((0, 0), (padding, padding), (padding, padding), (0, 0)),
                 mode="wrap")                      # == torch padding_mode='circular'
    Ho = (H + 2 * padding - kh) // stride + 1
    Wo = (W + 2 * padding - kw) // stride + 1
    cols = []
    for ky in range(kh):
        for kx in range(kw):
            cols.append(xp[:, ky:ky + (Ho - 1) * stride + 1:stride,
                           kx:kx + (Wo - 1) * stride + 1:stride, :])
    # last-dim ordering is (ky, kx, ci) -> matches the HWIO weight reshape
    patches = jnp.concatenate(cols, axis=-1)
    return patches.reshape(B * Ho * Wo, kh * kw * Cin), (B, Ho, Wo)


def conv2d_circular_xla(x, w, b, stride, padding, act="none"):
    """Tiny-channel circular convs left to XLA (encoder / 5x5 output head)."""
    xp = jnp.pad(x, ((0, 0), (padding, padding), (padding, padding), (0, 0)),
                 mode="wrap")
    y = lax.conv_general_dilated(xp, w, window_strides=(stride, stride),
                                 padding="VALID",
                                 dimension_numbers=("NHWC", "HWIO", "NHWC"))
    y = y + b
    if act == "relu":
        y = jnp.maximum(y, 0.0)
    return y


def pixel_shuffle_nhwc(x, r):
    """nn.PixelShuffle(r) semantics, NHWC layout."""
    B, H, W, C = x.shape
    Co = C // (r * r)
    x = x.reshape(B, H, W, Co, r, r)
    x = jnp.transpose(x, (0, 1, 4, 2, 5, 3))
    return x.reshape(B, H * r, W * r, Co)


def fuse_lstm_params(d, kernel, stride, padding, compute_dtype):
    """Fuse 8 gate convs into one [K, 4*hc] matmul weight (+ fused x-bias)."""
    wx = jnp.concatenate([d['Wxi']['w'], d['Wxf']['w'], d['Wxc']['w'], d['Wxo']['w']],
                         axis=-1)                  # [k,k,Cin,4*hc]
    bx = jnp.concatenate([d['Wxi']['b'], d['Wxf']['b'], d['Wxc']['b'], d['Wxo']['b']])
    wh = jnp.concatenate([d['Whi']['w'], d['Whf']['w'], d['Whc']['w'], d['Who']['w']],
                         axis=-1)                  # [3,3,hc,4*hc]
    kh, kw, cin, g = wx.shape
    hc = g // 4
    same_geom = (kernel == 3 and stride == 1 and padding == 1)
    if same_geom:
        # joint im2col over concat([x, h], channel) -> interleave per-tap channel blocks
        w = jnp.concatenate([wx, wh], axis=2).reshape(3 * 3 * (cin + hc), g)
    else:
        # x-patches first, h-patches second along K
        w = jnp.concatenate([wx.reshape(kh * kw * cin, g),
                             wh.reshape(3 * 3 * hc, g)], axis=0)
    return dict(w=w.astype(compute_dtype), b=bx, hc=hc, same_geom=same_geom)


def convlstm_cell_fused(fp, kernel, stride, padding, x, h, c, compute_dtype):
    hc = fp['hc']
    if fp['same_geom']:
        # single joint im2col: x and h share the 3x3/s1/p1 geometry
        xh = jnp.concatenate([x, h], axis=-1).astype(compute_dtype)
        patches, (B, Ho, Wo) = im2col_circular(xh, 3, 3, 1, 1)
    else:
        xp, (B, Ho, Wo) = im2col_circular(x.astype(compute_dtype),
                                          kernel, kernel, stride, padding)
        hp, _ = im2col_circular(h.astype(compute_dtype), 3, 3, 1, 1)
        patches = jnp.concatenate([xp, hp], axis=-1)
    assert (Ho, Wo) == (h.shape[1], h.shape[2]), "x/h spatial mismatch in ConvLSTM"
    h_new, c_new = fused_lstm_gates(patches, fp['w'], fp['b'], c.reshape(-1, hc), hc)
    return h_new.reshape(B, Ho, Wo, hc), c_new.reshape(B, Ho, Wo, hc)


# --------------------------- model -------------------------------------------

def init_params(key, cfg):
    c = float(np.sqrt(1.0 / (3 * 3 * 320)))       # matches initialize_weights()

    def uw(k, kh, kw, cin, cout):
        return jax.random.uniform(k, (kh, kw, cin, cout), jnp.float32, -c, c)

    in_ch = [cfg['input_channels']] + cfg['hidden_channels']
    keys = list(jax.random.split(key, 64))
    ki = 0
    params = {}
    for i in range(cfg['num_encoder']):
        # weight_norm: g is initialized to ||v||, so effective weight == v at init;
        # we therefore initialize the effective weight directly.
        params[f'encoder{i}'] = {
            'w': uw(keys[ki], cfg['kernel'][i], cfg['kernel'][i],
                    in_ch[i], cfg['hidden_channels'][i]),
            'b': jnp.zeros((cfg['hidden_channels'][i],), jnp.float32),
        }
        ki += 1
    for i in range(cfg['num_encoder'], cfg['num_encoder'] + cfg['num_convlstm']):
        hc = cfg['hidden_channels'][i]
        k = cfg['kernel'][i]
        d = {}
        for name in ['Wxi', 'Wxf', 'Wxc', 'Wxo']:
            d[name] = {
                'w': uw(keys[ki], k, k, in_ch[i], hc),
                'b': jnp.full((hc,), 1.0 if name == 'Wxo' else 0.0, jnp.float32),
            }
            ki += 1
        for name in ['Whi', 'Whf', 'Whc', 'Who']:
            d[name] = {'w': uw(keys[ki], 3, 3, hc, hc)}   # torch Wh* has no bias
            ki += 1
        params[f'convlstm{i}'] = d
    params['output'] = {'w': uw(keys[ki], 5, 5, 2, 1),
                        'b': jnp.zeros((1,), jnp.float32)}
    return params


def phycrnet_forward(params, initial_state, x, cfg, compute_dtype=jnp.bfloat16):
    dt = cfg['dt']
    num_enc, num_lstm = cfg['num_encoder'], cfg['num_convlstm']
    x = jnp.transpose(x, (0, 2, 3, 1))                     # NCHW -> NHWC

    # Fused gate weights are time-invariant: build (and cast) once, outside the loop.
    fused = {i: fuse_lstm_params(params[f'convlstm{i}'], cfg['kernel'][i],
                                 cfg['stride'][i], cfg['padding'][i], compute_dtype)
             for i in range(num_enc, num_enc + num_lstm)}

    internal_state = []
    outputs = []
    second_last_state = []
    for step in range(cfg['step']):
        xt = x
        for i in range(num_enc):
            p = params[f'encoder{i}']
            x = conv2d_circular_xla(x, p['w'], p['b'],
                                    cfg['stride'][i], cfg['padding'][i], act='relu')
        for i in range(num_enc, num_enc + num_lstm):
            idx = i - num_enc
            if step == 0:
                h0, c0 = initial_state[idx]
                internal_state.append((jnp.transpose(h0, (0, 2, 3, 1)),
                                       jnp.transpose(c0, (0, 2, 3, 1))))
            h, c = internal_state[idx]
            x, new_c = convlstm_cell_fused(fused[i], cfg['kernel'][i],
                                           cfg['stride'][i], cfg['padding'][i],
                                           x, h, c, compute_dtype)
            internal_state[idx] = (x, new_c)
        x = pixel_shuffle_nhwc(x, cfg['upscale_factor'])
        po = params['output']
        x = conv2d_circular_xla(x, po['w'], po['b'], stride=1, padding=2, act='none')
        x = xt + dt * x                                    # residual: fused by XLA
        if step == cfg['step'] - 2:
            second_last_state = list(internal_state)
        if step in cfg['effective_step']:
            outputs.append(jnp.transpose(x, (0, 3, 1, 2)))  # NHWC -> NCHW
    second_last_state = [(jnp.transpose(h, (0, 3, 1, 2)),
                          jnp.transpose(c, (0, 3, 1, 2)))
                         for (h, c) in second_last_state]
    return outputs, second_last_state


# --------------------------- demo ---------------------------------------------

if __name__ == "__main__":
    cfg = dict(
        input_channels=1,
        hidden_channels=[8, 32, 32],
        kernel=[4, 4, 3],
        stride=[2, 2, 1],
        padding=[1, 1, 1],
        num_encoder=2,
        num_convlstm=1,
        dt=0.05,
        upscale_factor=4,          # 4*4*2 == 32 hidden channels -> 2 ch after shuffle
        step=2,
        effective_step=[0, 1],
    )
    B, H, W = 2, 32, 32
    key = jax.random.PRNGKey(0)
    kp, kx, kh, kc = jax.random.split(key, 4)

    params = init_params(kp, cfg)
    x = jax.random.normal(kx, (B, cfg['input_channels'], H, W), jnp.float32)
    Hh = H // 4                    # spatial size after the two stride-2 encoders
    h0 = jax.random.normal(kh, (B, cfg['hidden_channels'][-1], Hh, Hh), jnp.float32)
    c0 = jax.random.normal(kc, (B, cfg['hidden_channels'][-1], Hh, Hh), jnp.float32)
    initial_state = [(h0, c0)]

    fwd = jax.jit(lambda p, s, xx: phycrnet_forward(p, s, xx, cfg))
    outputs, second_last_state = fwd(params, initial_state, x)
    jax.block_until_ready((outputs, second_last_state))

    assert len(outputs) == 2 and outputs[0].shape == (B, 1, H, W)
    assert second_last_state[0][0].shape == (B, cfg['hidden_channels'][-1], Hh, Hh)
    assert all(jnp.isfinite(o).all() for o in outputs)
    print("KERNEL_OK")
</pallas_src>

<mosaic_0001>
module attributes {stable_mosaic.version = 11 : i64} {
  func.func @_convlstm_fused_kernel(%arg0: i32, %arg1: memref<64x576xbf16, #tpu.memory_space<vmem>>, %arg2: memref<576x128xbf16, #tpu.memory_space<vmem>>, %arg3: memref<1x128xf32, #tpu.memory_space<vmem>>, %arg4: memref<64x32xf32, #tpu.memory_space<vmem>>, %arg5: memref<64x64xf32, #tpu.memory_space<vmem>>) attributes {dimension_semantics = [#tpu.dimension_semantics<parallel>], iteration_bounds = array<i64: 2>, scalar_prefetch = 0 : i64, scratch_operands = 0 : i64, tpu.core_type = #tpu.core_type<tc>, window_params = [{transform_indices = @transform_0, window_bounds = array<i64: 64, 576>}, {pipeline_mode = #tpu.pipeline_mode<synchronous>, transform_indices = @transform_1, window_bounds = array<i64: 576, 128>}, {pipeline_mode = #tpu.pipeline_mode<synchronous>, transform_indices = @transform_2, window_bounds = array<i64: 1, 128>}, {transform_indices = @transform_3, window_bounds = array<i64: 64, 32>}, {transform_indices = @transform_4, window_bounds = array<i64: 64, 64>}]} {
    %c0 = arith.constant 0 : index
    %c0_0 = arith.constant 0 : index
    %0 = vector.load %arg1[%c0, %c0_0] : memref<64x576xbf16, #tpu.memory_space<vmem>>, vector<64x576xbf16>
    %c0_1 = arith.constant 0 : index
    %c0_2 = arith.constant 0 : index
    %1 = vector.load %arg2[%c0_1, %c0_2] : memref<576x128xbf16, #tpu.memory_space<vmem>>, vector<576x128xbf16>
    %cst = arith.constant dense<0.000000e+00> : vector<64x128xf32>
    %2 = tpu.matmul %0, %1, %cst {dimension_numbers = #tpu.dot_dimension_numbers<[1], [0], [0], [1], [0, 0, 1, 1], [], []>} : vector<64x576xbf16>, vector<576x128xbf16>, vector<64x128xf32> -> vector<64x128xf32>
    %c0_3 = arith.constant 0 : index
    %c0_4 = arith.constant 0 : index
    %3 = vector.load %arg3[%c0_3, %c0_4] : memref<1x128xf32, #tpu.memory_space<vmem>>, vector<1x128xf32>
    %4 = vector.broadcast %3 : vector<1x128xf32> to vector<64x128xf32>
    %5 = arith.addf %2, %4 : vector<64x128xf32>
    %6 = vector.extract_strided_slice %5 {offsets = [0, 0], sizes = [64, 32], strides = [1, 1]} : vector<64x128xf32> to vector<64x32xf32>
    %7 = arith.negf %6 : vector<64x32xf32>
    %8 = math.exp %7 : vector<64x32xf32>
    %cst_5 = arith.constant 1.000000e+00 : f32
    %9 = vector.broadcast %cst_5 : f32 to vector<64x32xf32>
    %10 = arith.addf %9, %8 : vector<64x32xf32>
    %11 = arith.divf %9, %10 : vector<64x32xf32>
    %12 = vector.extract_strided_slice %5 {offsets = [0, 32], sizes = [64, 32], strides = [1, 1]} : vector<64x128xf32> to vector<64x32xf32>
    %13 = arith.negf %12 : vector<64x32xf32>
    %14 = math.exp %13 : vector<64x32xf32>
    %cst_6 = arith.constant 1.000000e+00 : f32
    %15 = vector.broadcast %cst_6 : f32 to vector<64x32xf32>
    %16 = arith.addf %15, %14 : vector<64x32xf32>
    %17 = arith.divf %15, %16 : vector<64x32xf32>
    %18 = vector.extract_strided_slice %5 {offsets = [0, 64], sizes = [64, 32], strides = [1, 1]} : vector<64x128xf32> to vector<64x32xf32>
    %19 = math.tanh %18 : vector<64x32xf32>
    %20 = vector.extract_strided_slice %5 {offsets = [0, 96], sizes = [64, 32], strides = [1, 1]} : vector<64x128xf32> to vector<64x32xf32>
    %21 = arith.negf %20 : vector<64x32xf32>
    %22 = math.exp %21 : vector<64x32xf32>
    %cst_7 = arith.constant 1.000000e+00 : f32
    %23 = vector.broadcast %cst_7 : f32 to vector<64x32xf32>
    %24 = arith.addf %23, %22 : vector<64x32xf32>
    %25 = arith.divf %23, %24 : vector<64x32xf32>
    %c0_8 = arith.constant 0 : index
    %c0_9 = arith.constant 0 : index
    %26 = vector.load %arg4[%c0_8, %c0_9] : memref<64x32xf32, #tpu.memory_space<vmem>>, vector<64x32xf32>
    %27 = arith.mulf %17, %26 : vector<64x32xf32>
    %28 = arith.mulf %11, %19 : vector<64x32xf32>
    %29 = arith.addf %27, %28 : vector<64x32xf32>
    %30 = math.tanh %29 : vector<64x32xf32>
    %31 = arith.mulf %25, %30 : vector<64x32xf32>
    %32 = tpu.concatenate %31, %29 in 1 : vector<64x32xf32>, vector<64x32xf32> -> vector<64x64xf32>
    %c0_10 = arith.constant 0 : index
    %c0_11 = arith.constant 0 : index
    %33 = vector.load %arg5[%c0_10, %c0_11] : memref<64x64xf32, #tpu.memory_space<vmem>>, vector<64x64xf32>
    tpu.vector_store %arg5[%c0_10, %c0_11], %32 {strides = array<i32>} : memref<64x64xf32, #tpu.memory_space<vmem>>, vector<64x64xf32>,
    return
  }
  func.func @transform_0(%arg0: i32) -> (i32, i32) {
    %c0_i32 = arith.constant 0 : i32
    %c0_i32_0 = arith.constant 0 : i32
    return %arg0, %c0_i32 : i32, i32
  }
  func.func @transform_1(%arg0: i32) -> (i32, i32) {
    %c0_i32 = arith.constant 0 : i32
    %c0_i32_0 = arith.constant 0 : i32
    %c0_i32_1 = arith.constant 0 : i32
    return %c0_i32, %c0_i32_0 : i32, i32
  }
  func.func @transform_2(%arg0: i32) -> (i32, i32) {
    %c0_i32 = arith.constant 0 : i32
    %c0_i32_0 = arith.constant 0 : i32
    %c0_i32_1 = arith.constant 0 : i32
    return %c0_i32, %c0_i32_0 : i32, i32
  }
  func.func @transform_3(%arg0: i32) -> (i32, i32) {
    %c0_i32 = arith.constant 0 : i32
    %c0_i32_0 = arith.constant 0 : i32
    return %arg0, %c0_i32 : i32, i32
  }
  func.func @transform_4(%arg0: i32) -> (i32, i32) {
    %c0_i32 = arith.constant 0 : i32
    %c0_i32_0 = arith.constant 0 : i32
    return %arg0, %c0_i32 : i32, i32
  }
}

</mosaic_0001>

<llo_original>
// kernel: _lambda_.2
$region0: #{_lambda_.2}
  #allocation0 [shape = 'u32[]', space=smem, size = 0x4, offset = 0x4, fixed_abs, tag = 'smem constant byte address 0x4 - core index']
  #allocation1 [shape = 'u32[144,128]{1,0:T(1,128)}', space=vmem, size = 0x12000, scoped, tag = 'internal scratch']
  %s0 = inlined_call_operand.vmem [shape: bf16[128,576], index: 0, kind: input, shape index: {}]
  %s1 = inlined_call_operand.vmem [shape: bf16[576,128], index: 1, kind: input, shape index: {}]
  %s2 = inlined_call_operand.vmem [shape: f32[1,128], index: 2, kind: input, shape index: {}]
  %s3 = inlined_call_operand.vmem [shape: f32[128,32], index: 3, kind: input, shape index: {}]
  %s4 = inlined_call_operand.vmem [shape: f32[128,64], index: 4, kind: output, shape index: {}]
  %s5 = sld [smem:[#allocation0]]
  $region49: #{_lambda_.2} parent=0
    _
  %s7 = ssub.s32 1, %s5
  %s8 = scalar_select 0, %s7, %s5
  loop: start=0, step=1, limit=4
  $region2: #{_lambda_.2} parent=0 // loop_pre_header
    _
  $region3: #{_lambda_.2} parent=0 // loop_header
    %s10 = sphi 0, %s14
    %p11 = scmp.ge.s32.totalorder %s10, 4
    %s20 = sphi 0, %s22
    %s23 = sphi 0, %s20
    %s24 = sphi 0, %s23
    %s40 = sphi 0, %s24
    %s44 = sphi 0, %s44
    %s46 = sphi 0, %s44
    %s47 = sphi 0, %s46
    %s61 = sphi 0, %s47
    %s65 = sphi 0, %s65
    %s67 = sphi 0, %s65
    %s68 = sphi 0, %s67
    %s82 = sphi 0, %s68
    %s88 = sphi 0, %s90
    %s91 = sphi 0, %s88
    %s92 = sphi 0, %s91
    %s108 = sphi 0, %s92
    %s114 = sphi 0, %s116
    %s117 = sphi 0, %s114
    %s118 = sphi 0, %s117
    %s134 = sphi 0, %s118
  $region4: #{_lambda_.2} parent=0 // loop_header_branch
    %13 = sbr.rel (%p11) target = $region8
  $region5: #{_lambda_.2} parent=0 // loop_body
    %s15 = ssub.s32 %s10, 1
    %s16 = ssub.s32 %s10, 2
    %s17 = sadd.s32 %s10, 1
    %s18 = ssub.s32 %s10, %s17
    %p19 = scmp.eq.s32.totalorder %s18, 0
    %s21 = sadd.s32 %s20, 1
    %s22 = scalar_select %p19, %s20, %s21
    %p25 = pneg %p19
    %p26 = scmp.eq.s32.totalorder %s10, 1
    %p27 = por %p25, %p26
    %p28 = scmp.ne.s32.totalorder %s20, %s23
    %p29 = scmp.eq.s32.totalorder %s10, 0
    %p30 = por %p28, %p29
    %p31 = scmp.ne.s32.totalorder %s20, %s23
    %p32 = scmp.eq.s32.totalorder %s15, 1
    %p33 = por %p31, %p32
    %p34 = scmp.ne.s32.totalorder %s23, %s24
    %p35 = scmp.eq.s32.totalorder %s15, 0
    %p36 = por %p34, %p35
    %p37 = scmp.ne.s32.totalorder %s23, %s24
    %p38 = scmp.eq.s32.totalorder %s16, 1
    %p39 = por %p37, %p38
    %p41 = scmp.ne.s32.totalorder %s24, %s40
    %p42 = scmp.eq.s32.totalorder %s16, 0
    %p43 = por %p41, %p42
    %s45 = sadd.s32 %s44, 1
    %p48 = scmp.eq.s32.totalorder %s10, 1
    %p49 = scmp.ne.s32.totalorder %s44, %s46
    %p50 = scmp.eq.s32.totalorder %s10, 0
    %p51 = por %p49, %p50
    %p52 = scmp.ne.s32.totalorder %s44, %s46
    %p53 = scmp.eq.s32.totalorder %s15, 1
    %p54 = por %p52, %p53
    %p55 = scmp.ne.s32.totalorder %s46, %s47
    %p56 = scmp.eq.s32.totalorder %s15, 0
    %p57 = por %p55, %p56
    %p58 = scmp.ne.s32.totalorder %s46, %s47
    %p59 = scmp.eq.s32.totalorder %s16, 1
    %p60 = por %p58, %p59
    %p62 = scmp.ne.s32.totalorder %s47, %s61
    %p63 = scmp.eq.s32.totalorder %s16, 0
    %p64 = por %p62, %p63
    %s66 = sadd.s32 %s65, 1
    %p69 = scmp.eq.s32.totalorder %s10, 1
    %p70 = scmp.ne.s32.totalorder %s65, %s67
    %p71 = scmp.eq.s32.totalorder %s10, 0
    %p72 = por %p70, %p71
    %p73 = scmp.ne.s32.totalorder %s65, %s67
    %p74 = scmp.eq.s32.totalorder %s15, 1
    %p75 = por %p73, %p74
    %p76 = scmp.ne.s32.totalorder %s67, %s68
    %p77 = scmp.eq.s32.totalorder %s15, 0
    %p78 = por %p76, %p77
    %p79 = scmp.ne.s32.totalorder %s67, %s68
    %p80 = scmp.eq.s32.totalorder %s16, 1
    %p81 = por %p79, %p80
    %p83 = scmp.ne.s32.totalorder %s68, %s82
    %p84 = scmp.eq.s32.totalorder %s16, 0
    %p85 = por %p83, %p84
    %s86 = ssub.s32 %s10, %s17
    %p87 = scmp.eq.s32.totalorder %s86, 0
    %s89 = sadd.s32 %s88, 1
    %s90 = scalar_select %p87, %s88, %s89
    %p93 = pneg %p87
    %p94 = scmp.eq.s32.totalorder %s10, 1
    %p95 = por %p93, %p94
    %p96 = scmp.ne.s32.totalorder %s88, %s91
    %p97 = scmp.eq.s32.totalorder %s10, 0
    %p98 = por %p96, %p97
    %p99 = scmp.ne.s32.totalorder %s88, %s91
    %p100 = scmp.eq.s32.totalorder %s15, 1
    %p101 = por %p99, %p100
    %p102 = scmp.ne.s32.totalorder %s91, %s92
    %p103 = scmp.eq.s32.totalorder %s15, 0
    %p104 = por %p102, %p103
    %p105 = scmp.ne.s32.totalorder %s91, %s92
    %p106 = scmp.eq.s32.totalorder %s16, 1
    %p107 = por %p105, %p106
    %p109 = scmp.ne.s32.totalorder %s92, %s108
    %p110 = scmp.eq.s32.totalorder %s16, 0
    %p111 = por %p109, %p110
    %s112 = ssub.s32 %s10, %s17
    %p113 = scmp.eq.s32.totalorder %s112, 0
    %s115 = sadd.s32 %s114, 1
    %s116 = scalar_select %p113, %s114, %s115
    %p119 = pneg %p113
    %p120 = scmp.eq.s32.totalorder %s10, 1
    %p121 = por %p119, %p120
    %p122 = scmp.ne.s32.totalorder %s114, %s117
    %p123 = scmp.eq.s32.totalorder %s10, 0
    %p124 = por %p122, %p123
    %p125 = scmp.ne.s32.totalorder %s114, %s117
    %p126 = scmp.eq.s32.totalorder %s15, 1
    %p127 = por %p125, %p126
    %p128 = scmp.ne.s32.totalorder %s117, %s118
    %p129 = scmp.eq.s32.totalorder %s15, 0
    %p130 = por %p128, %p129
    %p131 = scmp.ne.s32.totalorder %s117, %s118
    %p132 = scmp.eq.s32.totalorder %s16, 1
    %p133 = por %p131, %p132
    %p135 = scmp.ne.s32.totalorder %s118, %s134
    %p136 = scmp.eq.s32.totalorder %s16, 0
    %p137 = por %p135, %p136
    %p138 = scmp.le.s32.totalorder 1, %s10
    %p139 = scmp.lt.s32.totalorder %s10, 3
    %p140 = pnand %p138, %p139
    %p141 = pneg %p140
    // Predicated region
    $region9: #{_lambda_.2} parent=5 // pred_check
      _
    $region10: #{_lambda_.2} parent=5 // pred_check_branch
      %143 = sbr.rel (%p140) target = $region12
    $region11: #{_lambda_.2} parent=5 // pred_region
      %s144 = ssub.s32 %s10, 1
      // Predicated region
      $region13: #{_lambda_.2} parent=11 // pred_check
        %p145 = pneg %p57
      $region14: #{_lambda_.2} parent=11 // pred_check_branch
        %147 = sbr.rel (%p145) target = $region16
      $region15: #{_lambda_.2} parent=11 // pred_region
        _
      $region16: #{_lambda_.2} parent=11 // pred_fallthru
        _
      // Predicated region
      $region17: #{_lambda_.2} parent=11 // pred_check
        %p148 = pneg %p78
      $region18: #{_lambda_.2} parent=11 // pred_check_branch
        %150 = sbr.rel (%p148) target = $region20
      $region19: #{_lambda_.2} parent=11 // pred_region
        _
      $region20: #{_lambda_.2} parent=11 // pred_fallthru
        _
    $region12: #{_lambda_.2} parent=5 // pred_fallthru
      _
    %p151 = scmp.lt.s32.totalorder %s10, 2
    // Predicated region
    $region21: #{_lambda_.2} parent=5 // pred_check
      %p152 = pneg %p151
    $region22: #{_lambda_.2} parent=5 // pred_check_branch
      %154 = sbr.rel (%p152) target = $region24
    $region23: #{_lambda_.2} parent=5 // pred_region
      // Predicated region
      $region25: #{_lambda_.2} parent=23 // pred_check
        %p155 = pneg %p30
      $region26: #{_lambda_.2} parent=23 // pred_check_branch
        %157 = sbr.rel (%p155) target = $region28
      $region27: #{_lambda_.2} parent=23 // pred_region
        %s158 = smul.u32 8, %s10
        %p159 = scmp.lt.s32.totalorder %s158, 15
        %s160 = scalar_select %p159, %s158, 15
        %s161 = smul.addr %s160, 5
        %s162 = smul.addr %s161, 4
        %s163 = scalar_lea.vmem %s0, %s162
        %s164 = smul.u32 8, %s10
      $region28: #{_lambda_.2} parent=23 // pred_fallthru
        _
      // Predicated region
      $region29: #{_lambda_.2} parent=23 // pred_check
        %p165 = pneg %p98
      $region30: #{_lambda_.2} parent=23 // pred_check_branch
        %167 = sbr.rel (%p165) target = $region32
      $region31: #{_lambda_.2} parent=23 // pred_region
        %s168 = smul.u32 8, %s10
        %p169 = scmp.lt.s32.totalorder %s168, 15
        %s170 = scalar_select %p169, %s168, 15
        %s171 = smul.addr %s170, 8
        %s172 = scalar_lea.vmem %s3, %s171
        %s173 = smul.u32 8, %s10
      $region32: #{_lambda_.2} parent=23 // pred_fallthru
        _
    $region24: #{_lambda_.2} parent=5 // pred_fallthru
      _
    %p174 = scmp.le.s32.totalorder 1, %s10
    %p175 = scmp.lt.s32.totalorder %s10, 3
    %p176 = pnand %p174, %p175
    %p177 = pneg %p176
    // Predicated region
    $region33: #{_lambda_.2} parent=5 // pred_check
      _
    $region34: #{_lambda_.2} parent=5 // pred_check_branch
      %179 = sbr.rel (%p176) target = $region36
    $region35: #{_lambda_.2} parent=5 // pred_region
      %s180 = ssub.s32 %s10, 1
      %s181 = smul.u32 8, %s15
      %p182 = scmp.lt.s32.totalorder %s181, 15
      %s183 = scalar_select %p182, %s181, 15
      %s184 = smul.addr %s183, 5
      %s185 = smul.addr %s184, 4
      %s186 = scalar_lea.vmem %s0, %s185
      %p187 = pneg %p36
      %p188 = pneg %p33
      %p189 = pneg %p57
      %p190 = pneg %p54
      %p191 = pneg %p78
      %p192 = pneg %p75
      %s193 = smul.u32 8, %s15
      %p194 = scmp.lt.s32.totalorder %s193, 15
      %s195 = scalar_select %p194, %s193, 15
      %s196 = smul.addr %s195, 8
      %s197 = scalar_lea.vmem %s3, %s196
      %p198 = pneg %p104
      %p199 = pneg %p101
      %p200 = pneg %p130
      %p201 = pneg %p127
      %s202 = smul.u32 8, %s15
      %p203 = scmp.lt.s32.totalorder %s202, 15
      %s204 = scalar_select %p203, %s202, 15
      %s205 = smul.addr %s204, 8
      %s206 = scalar_lea.vmem %s4, %s205
      %s207 = smul.u32 8, %s15
      %p208 = scmp.lt.s32.totalorder %s207, 15
      %s209 = scalar_select %p208, %s207, 15
      %s210 = smul.addr %s209, 5
      %s211 = smul.addr %s210, 4
      %s212 = scalar_lea.vmem %s0, %s211
      %s213 = smul.u32 8, %s15
      %s214 = smul.u32 8, %s15
      %p215 = scmp.lt.s32.totalorder %s214, 15
      %s216 = scalar_select %p215, %s214, 15
      %s217 = smul.addr %s216, 8
      %s218 = scalar_lea.vmem %s3, %s217
      %s219 = smul.u32 8, %s15
      %s220 = smul.u32 8, %s15
      %p221 = scmp.lt.s32.totalorder %s220, 15
      %s222 = scalar_select %p221, %s220, 15
      %s223 = smul.addr %s222, 8
      %s224 = scalar_lea.vmem %s4, %s223
      %s225 = smul.u32 8, %s15
      %v227 = vld [vmem:[%s212] sm:$0xff]
      %v228 = vld [vmem:[%s212 + $0x8] sm:$0xff]
      %v229 = vld [vmem:[%s212 + $0x10] sm:$0xf]
      %v230 = vld [vmem:[%s212 + $0x14] sm:$0xff]
      %v231 = vld [vmem:[%s212 + $0x1c] sm:$0xff]
      %v232 = vld [vmem:[%s212 + $0x24] sm:$0xf]
      %v233 = vld [vmem:[%s212 + $0x28] sm:$0xff]
      %v234 = vld [vmem:[%s212 + $0x30] sm:$0xff]
      %v235 = vld [vmem:[%s212 + $0x38] sm:$0xf]
      %v236 = vld [vmem:[%s212 + $0x3c] sm:$0xff]
      %v237 = vld [vmem:[%s212 + $0x44] sm:$0xff]
      %v238 = vld [vmem:[%s212 + $0x4c] sm:$0xf]
      %v239 = vld [vmem:[%s212 + $0x50] sm:$0xff]
      %v240 = vld [vmem:[%s212 + $0x58] sm:$0xff]
      %v241 = vld [vmem:[%s212 + $0x60] sm:$0xf]
      %v242 = vld [vmem:[%s212 + $0x64] sm:$0xff]
      %v243 = vld [vmem:[%s212 + $0x6c] sm:$0xff]
      %v244 = vld [vmem:[%s212 + $0x74] sm:$0xf]
      %v245 = vld [vmem:[%s212 + $0x78] sm:$0xff]
      %v246 = vld [vmem:[%s212 + $0x80] sm:$0xff]
      %v247 = vld [vmem:[%s212 + $0x88] sm:$0xf]
      %v248 = vld [vmem:[%s212 + $0x8c] sm:$0xff]
      %v249 = vld [vmem:[%s212 + $0x94] sm:$0xff]
      %v250 = vld [vmem:[%s212 + $0x9c] sm:$0xf]
      %v251 = vld [vmem:[%s1] sm:$0xf]
      %v252 = vld [vmem:[%s1 + $0x4] sm:$0xf]
      %v253 = vld [vmem:[%s1 + $0x8] sm:$0xf]
      %v254 = vld [vmem:[%s1 + $0xc] sm:$0xf]
      %v255 = vld [vmem:[%s1 + $0x10] sm:$0xf]
      %v256 = vld [vmem:[%s1 + $0x14] sm:$0xf]
      %v257 = vld [vmem:[%s1 + $0x18] sm:$0xf]
      %v258 = vld [vmem:[%s1 + $0x1c] sm:$0xf]
      %v259 = vld [vmem:[%s1 + $0x20] sm:$0xf]
      %v260 = vld [vmem:[%s1 + $0x24] sm:$0xf]
      %v261 = vld [vmem:[%s1 + $0x28] sm:$0xf]
      %v262 = vld [vmem:[%s1 + $0x2c] sm:$0xf]
      %v263 = vld [vmem:[%s1 + $0x30] sm:$0xf]
      %v264 = vld [vmem:[%s1 + $0x34] sm:$0xf]
      %v265 = vld [vmem:[%s1 + $0x38] sm:$0xf]
      %v266 = vld [vmem:[%s1 + $0x3c] sm:$0xf]
      %v267 = vld [vmem:[%s1 + $0x40] sm:$0xf]
      %v268 = vld [vmem:[%s1 + $0x44] sm:$0xf]
      %v269 = vld [vmem:[%s1 + $0x48] sm:$0xf]
      %v270 = vld [vmem:[%s1 + $0x4c] sm:$0xf]
      %v271 = vld [vmem:[%s1 + $0x50] sm:$0xf]
      %v272 = vld [vmem:[%s1 + $0x54] sm:$0xf]
      %v273 = vld [vmem:[%s1 + $0x58] sm:$0xf]
      %v274 = vld [vmem:[%s1 + $0x5c] sm:$0xf]
      %v275 = vld [vmem:[%s1 + $0x60] sm:$0xf]
      %v276 = vld [vmem:[%s1 + $0x64] sm:$0xf]
      %v277 = vld [vmem:[%s1 + $0x68] sm:$0xf]
      %v278 = vld [vmem:[%s1 + $0x6c] sm:$0xf]
      %v279 = vld [vmem:[%s1 + $0x70] sm:$0xf]
      %v280 = vld [vmem:[%s1 + $0x74] sm:$0xf]
      %v281 = vld [vmem:[%s1 + $0x78] sm:$0xf]
      %v282 = vld [vmem:[%s1 + $0x7c] sm:$0xf]
      %v283 = vld [vmem:[%s1 + $0x80] sm:$0xf]
      %v284 = vld [vmem:[%s1 + $0x84] sm:$0xf]
      %v285 = vld [vmem:[%s1 + $0x88] sm:$0xf]
      %v286 = vld [vmem:[%s1 + $0x8c] sm:$0xf]
      %v287 = vld [vmem:[%s1 + $0x90] sm:$0xf]
      %v288 = vld [vmem:[%s1 + $0x94] sm:$0xf]
      %v289 = vld [vmem:[%s1 + $0x98] sm:$0xf]
      %v290 = vld [vmem:[%s1 + $0x9c] sm:$0xf]
      %v291 = vld [vmem:[%s1 + $0xa0] sm:$0xf]
      %v292 = vld [vmem:[%s1 + $0xa4] sm:$0xf]
      %v293 = vld [vmem:[%s1 + $0xa8] sm:$0xf]
      %v294 = vld [vmem:[%s1 + $0xac] sm:$0xf]
      %v295 = vld [vmem:[%s1 + $0xb0] sm:$0xf]
      %v296 = vld [vmem:[%s1 + $0xb4] sm:$0xf]
      %v297 = vld [vmem:[%s1 + $0xb8] sm:$0xf]
      %v298 = vld [vmem:[%s1 + $0xbc] sm:$0xf]
      %v299 = vld [vmem:[%s1 + $0xc0] sm:$0xf]
      %v300 = vld [vmem:[%s1 + $0xc4] sm:$0xf]
      %v301 = vld [vmem:[%s1 + $0xc8] sm:$0xf]
      %v302 = vld [vmem:[%s1 + $0xcc] sm:$0xf]
      %v303 = vld [vmem:[%s1 + $0xd0] sm:$0xf]
      %v304 = vld [vmem:[%s1 + $0xd4] sm:$0xf]
      %v305 = vld [vmem:[%s1 + $0xd8] sm:$0xf]
      %v306 = vld [vmem:[%s1 + $0xdc] sm:$0xf]
      %v307 = vld [vmem:[%s1 + $0xe0] sm:$0xf]
      %v308 = vld [vmem:[%s1 + $0xe4] sm:$0xf]
      %v309 = vld [vmem:[%s1 + $0xe8] sm:$0xf]
      %v310 = vld [vmem:[%s1 + $0xec] sm:$0xf]
      %v311 = vld [vmem:[%s1 + $0xf0] sm:$0xf]
      %v312 = vld [vmem:[%s1 + $0xf4] sm:$0xf]
      %v313 = vld [vmem:[%s1 + $0xf8] sm:$0xf]
      %v314 = vld [vmem:[%s1 + $0xfc] sm:$0xf]
      %v315 = vld [vmem:[%s1 + $0x100] sm:$0xf]
      %v316 = vld [vmem:[%s1 + $0x104] sm:$0xf]
      %v317 = vld [vmem:[%s1 + $0x108] sm:$0xf]
      %v318 = vld [vmem:[%s1 + $0x10c] sm:$0xf]
      %v319 = vld [vmem:[%s1 + $0x110] sm:$0xf]
      %v320 = vld [vmem:[%s1 + $0x114] sm:$0xf]
      %v321 = vld [vmem:[%s1 + $0x118] sm:$0xf]
      %v322 = vld [vmem:[%s1 + $0x11c] sm:$0xf]
      %v323 = vld [vmem:[%s2] sm:$0x1]
      %v325 = vlaneseq
      %v326 = vshrl.u32 %v325, 7
      %v327 = vsub.s32 0, %v326
      %v328 = vrot.slane %v323, %v327
      %v354 = vunpack.c.l.b16 %v227
      %v355 = vunpack.c.h.b16 %v227
      %v356 = vunpack.c.l.b16 %v228
      %v357 = vunpack.c.h.b16 %v228
      %v358 = vunpack.c.l.b16 %v229
      %v359 = vunpack.c.l.b16 %v230
      %v360 = vunpack.c.h.b16 %v230
      %v361 = vunpack.c.l.b16 %v231
      %v362 = vunpack.c.h.b16 %v231
      %v363 = vunpack.c.l.b16 %v232
      %v364 = vunpack.c.l.b16 %v233
      %v365 = vunpack.c.h.b16 %v233
      %v366 = vunpack.c.l.b16 %v234
      %v367 = vunpack.c.h.b16 %v234
      %v368 = vunpack.c.l.b16 %v235
      %v369 = vunpack.c.l.b16 %v236
      %v370 = vunpack.c.h.b16 %v236
      %v371 = vunpack.c.l.b16 %v237
      %v372 = vunpack.c.h.b16 %v237
      %v373 = vunpack.c.l.b16 %v238
      %v374 = vunpack.c.l.b16 %v239
      %v375 = vunpack.c.h.b16 %v239
      %v376 = vunpack.c.l.b16 %v240
      %v377 = vunpack.c.h.b16 %v240
      %v378 = vunpack.c.l.b16 %v241
      %v379 = vunpack.c.l.b16 %v242
      %v380 = vunpack.c.h.b16 %v242
      %v381 = vunpack.c.l.b16 %v243
      %v382 = vunpack.c.h.b16 %v243
      %v383 = vunpack.c.l.b16 %v244
      %v384 = vunpack.c.l.b16 %v245
      %v385 = vunpack.c.h.b16 %v245
      %v386 = vunpack.c.l.b16 %v246
      %v387 = vunpack.c.h.b16 %v246
      %v388 = vunpack.c.l.b16 %v247
      %v389 = vunpack.c.l.b16 %v248
      %v390 = vunpack.c.h.b16 %v248
      %v391 = vunpack.c.l.b16 %v249
      %v392 = vunpack.c.h.b16 %v249
      %v393 = vunpack.c.l.b16 %v250
      %v394 = vpack.c.b16 %v359, %v354
      %v395 = vpack.c.b16 %v360, %v355
      %v396 = vpack.c.b16 %v361, %v356
      %v397 = vpack.c.b16 %v362, %v357
      %v398 = vpack.c.b16 %v363, %v358
      %v399 = vpack.c.b16 %v369, %v364
      %v400 = vpack.c.b16 %v370, %v365
      %v401 = vpack.c.b16 %v371, %v366
      %v402 = vpack.c.b16 %v372, %v367
      %v403 = vpack.c.b16 %v373, %v368
      %v404 = vpack.c.b16 %v379, %v374
      %v405 = vpack.c.b16 %v380, %v375
      %v406 = vpack.c.b16 %v381, %v376
      %v407 = vpack.c.b16 %v382, %v377
      %v408 = vpack.c.b16 %v383, %v378
      %v409 = vpack.c.b16 %v389, %v384
      %v410 = vpack.c.b16 %v390, %v385
      %v411 = vpack.c.b16 %v391, %v386
      %v412 = vpack.c.b16 %v392, %v387
      %v413 = vpack.c.b16 %v393, %v388
      %v502 = vunpack.c.l.b16 %v251
      %v503 = vunpack.c.l.b16 %v252
      %v504 = vunpack.c.l.b16 %v253
      %v505 = vunpack.c.l.b16 %v254
      %v506 = vunpack.c.l.b16 %v255
      %v507 = vunpack.c.l.b16 %v256
      %v508 = vunpack.c.l.b16 %v257
      %v509 = vunpack.c.l.b16 %v258
      %v510 = vunpack.c.l.b16 %v259
      %v511 = vunpack.c.l.b16 %v260
      %v512 = vunpack.c.l.b16 %v261
      %v513 = vunpack.c.l.b16 %v262
      %v514 = vunpack.c.l.b16 %v263
      %v515 = vunpack.c.l.b16 %v264
      %v516 = vunpack.c.l.b16 %v265
      %v517 = vunpack.c.l.b16 %v266
      %v518 = vunpack.c.l.b16 %v267
      %v519 = vunpack.c.l.b16 %v268
      %v520 = vunpack.c.l.b16 %v269
      %v521 = vunpack.c.l.b16 %v270
      %v522 = vunpack.c.l.b16 %v271
      %v523 = vunpack.c.l.b16 %v272
      %v524 = vunpack.c.l.b16 %v273
      %v525 = vunpack.c.l.b16 %v274
      %v526 = vunpack.c.l.b16 %v275
      %v527 = vunpack.c.l.b16 %v276
      %v528 = vunpack.c.l.b16 %v277
      %v529 = vunpack.c.l.b16 %v278
      %v530 = vunpack.c.l.b16 %v279
      %v531 = vunpack.c.l.b16 %v280
      %v532 = vunpack.c.l.b16 %v281
      %v533 = vunpack.c.l.b16 %v282
      %v534 = vunpack.c.l.b16 %v283
      %v535 = vunpack.c.l.b16 %v284
      %v536 = vunpack.c.l.b16 %v285
      %v537 = vunpack.c.l.b16 %v286
      %v538 = vunpack.c.l.b16 %v287
      %v539 = vunpack.c.l.b16 %v288
      %v540 = vunpack.c.l.b16 %v289
      %v541 = vunpack.c.l.b16 %v290
      %v542 = vunpack.c.l.b16 %v291
      %v543 = vunpack.c.l.b16 %v292
      %v544 = vunpack.c.l.b16 %v293
      %v545 = vunpack.c.l.b16 %v294
      %v546 = vunpack.c.l.b16 %v295
      %v547 = vunpack.c.l.b16 %v296
      %v548 = vunpack.c.l.b16 %v297
      %v549 = vunpack.c.l.b16 %v298
      %v550 = vunpack.c.l.b16 %v299
      %v551 = vunpack.c.l.b16 %v300
      %v552 = vunpack.c.l.b16 %v301
      %v553 = vunpack.c.l.b16 %v302
      %v554 = vunpack.c.l.b16 %v303
      %v555 = vunpack.c.l.b16 %v304
      %v556 = vunpack.c.l.b16 %v305
      %v557 = vunpack.c.l.b16 %v306
      %v558 = vunpack.c.l.b16 %v307
      %v559 = vunpack.c.l.b16 %v308
      %v560 = vunpack.c.l.b16 %v309
      %v561 = vunpack.c.l.b16 %v310
      %v562 = vunpack.c.l.b16 %v311
      %v563 = vunpack.c.l.b16 %v312
      %v564 = vunpack.c.l.b16 %v313
      %v565 = vunpack.c.l.b16 %v314
      %v566 = vunpack.c.l.b16 %v315
      %v567 = vunpack.c.l.b16 %v316
      %v568 = vunpack.c.l.b16 %v317
      %v569 = vunpack.c.l.b16 %v318
      %v570 = vunpack.c.l.b16 %v319
      %v571 = vunpack.c.l.b16 %v320
      %v572 = vunpack.c.l.b16 %v321
      %v573 = vunpack.c.l.b16 %v322
      %v574 = vpack.c.b16 %v503, %v502
      %v575 = vpack.c.b16 %v505, %v504
      %v576 = vpack.c.b16 %v507, %v506
      %v577 = vpack.c.b16 %v509, %v508
      %v578 = vpack.c.b16 %v511, %v510
      %v579 = vpack.c.b16 %v513, %v512
      %v580 = vpack.c.b16 %v515, %v514
      %v581 = vpack.c.b16 %v517, %v516
      %v582 = vpack.c.b16 %v519, %v518
      %v583 = vpack.c.b16 %v521, %v520
      %v584 = vpack.c.b16 %v523, %v522
      %v585 = vpack.c.b16 %v525, %v524
      %v586 = vpack.c.b16 %v527, %v526
      %v587 = vpack.c.b16 %v529, %v528
      %v588 = vpack.c.b16 %v531, %v530
      %v589 = vpack.c.b16 %v533, %v532
      %v590 = vpack.c.b16 %v535, %v534
      %v591 = vpack.c.b16 %v537, %v536
      %v592 = vpack.c.b16 %v539, %v538
      %v593 = vpack.c.b16 %v541, %v540
      %v594 = vpack.c.b16 %v543, %v542
      %v595 = vpack.c.b16 %v545, %v544
      %v596 = vpack.c.b16 %v547, %v546
      %v597 = vpack.c.b16 %v549, %v548
      %v598 = vpack.c.b16 %v551, %v550
      %v599 = vpack.c.b16 %v553, %v552
      %v600 = vpack.c.b16 %v555, %v554
      %v601 = vpack.c.b16 %v557, %v556
      %v602 = vpack.c.b16 %v559, %v558
      %v603 = vpack.c.b16 %v561, %v560
      %v604 = vpack.c.b16 %v563, %v562
      %v605 = vpack.c.b16 %v565, %v564
      %v606 = vpack.c.b16 %v567, %v566
      %v607 = vpack.c.b16 %v569, %v568
      %v608 = vpack.c.b16 %v571, %v570
      %v609 = vpack.c.b16 %v573, %v572
      %vm646 = vcmask 523264
      %v648 = vsel %vm646, %v398, 0
      %v651 = vsel %vm646, %v403, 0
      %v654 = vsel %vm646, %v408, 0
      %v657 = vsel %vm646, %v413, 0
      %659 = vmatprep.subr.bf16.mxu0 0
      %660 = vmatpush1.bf16.msra.mxu0 %v574
      %661 = vmatprep.subr.bf16.mxu0 0
      %662 = vmatpush1.bf16.msra.mxu0 %v575
      %663 = vmatprep.subr.bf16.mxu0 0
      %664 = vmatpush1.bf16.msra.mxu0 %v576
      %665 = vmatprep.subr.bf16.mxu0 0
      %666 = vmatpush1.bf16.msra.mxu0 %v577
      %667 = vmatprep.subr.bf16.mxu0 0
      %668 = vmatpush1.bf16.msra.mxu0 %v578
      %669 = vmatprep.subr.bf16.mxu0 0
      %670 = vmatpush1.bf16.msra.mxu0 %v579
      %671 = vmatprep.subr.bf16.mxu0 0
      %672 = vmatpush1.bf16.msra.mxu0 %v580
      %673 = vmatprep.subr.bf16.mxu0 0
      %674 = vmatpush1.bf16.msra.mxu0 %v581
      %675 = vmatprep.subr.bf16.mxu0 0
      %676 = vmatpush1.bf16.msra.mxu0 %v582
      %677 = vmatprep.subr.bf16.mxu0 0
      %678 = vmatpush1.bf16.msra.mxu0 %v583
      %679 = vmatprep.subr.bf16.mxu0 0
      %680 = vmatpush1.bf16.msra.mxu0 %v584
      %681 = vmatprep.subr.bf16.mxu0 0
      %682 = vmatpush1.bf16.msra.mxu0 %v585
      %683 = vmatprep.subr.bf16.mxu0 0
      %684 = vmatpush1.bf16.msra.mxu0 %v586
      %685 = vmatprep.subr.bf16.mxu0 0
      %686 = vmatpush1.bf16.msra.mxu0 %v587
      %687 = vmatprep.subr.bf16.mxu0 0
      %688 = vmatpush1.bf16.msra.mxu0 %v588
      %689 = vmatprep.subr.bf16.mxu0 0
      %690 = vmatpush1.bf16.msra.mxu0 %v589
      %691 = vmatprep.mubr.bf16.mxu0 %v395
      %692 = vmatmul.mubr.bf16.gmra.mrb[0].mxu0 %v394
      %v693 = vpop.f32.mrb[0].mxu0
      %v694 = vadd.f32 %v328, %v693
      %v695 = vpop.f32.mrb[0].mxu0
      %v696 = vpop.f32.mrb[0].mxu0
      %v697 = vadd.f32 %v328, %v696
      %v698 = vpop.f32.mrb[0].mxu0
      %699 = vmatprep.mubr.bf16.mxu0 %v400
      %700 = vmatmul.mubr.bf16.gmra.mrb[0].mxu0 %v399
      %v701 = vpop.f32.mrb[0].mxu0
      %v702 = vadd.f32 %v328, %v701
      %v703 = vpop.f32.mrb[0].mxu0
      %v704 = vpop.f32.mrb[0].mxu0
      %v705 = vadd.f32 %v328, %v704
      %v706 = vpop.f32.mrb[0].mxu0
      %707 = vmatprep.mubr.bf16.mxu0 %v405
      %708 = vmatmul.mubr.bf16.gmra.mrb[0].mxu0 %v404
      %v709 = vpop.f32.mrb[0].mxu0
      %v710 = vadd.f32 %v328, %v709
      %v711 = vpop.f32.mrb[0].mxu0
      %v712 = vpop.f32.mrb[0].mxu0
      %v713 = vadd.f32 %v328, %v712
      %v714 = vpop.f32.mrb[0].mxu0
      %715 = vmatprep.mubr.bf16.mxu0 %v410
      %716 = vmatmul.mubr.bf16.gmra.mrb[0].mxu0 %v409
      %v717 = vpop.f32.mrb[0].mxu0
      %v718 = vadd.f32 %v328, %v717
      %v719 = vpop.f32.mrb[0].mxu0
      %v720 = vpop.f32.mrb[0].mxu0
      %v721 = vadd.f32 %v328, %v720
      %v722 = vpop.f32.mrb[0].mxu0
      %723 = vdwg.mxu0
      %724 = vmatprep.subr.bf16.mxu0 0
      %725 = vmatpush1.bf16.msra.mxu0 %v590
      %726 = vmatprep.subr.bf16.mxu0 0
      %727 = vmatpush1.bf16.msra.mxu0 %v591
      %728 = vmatprep.subr.bf16.mxu0 0
      %729 = vmatpush1.bf16.msra.mxu0 %v592
      %730 = vmatprep.subr.bf16.mxu0 0
      %731 = vmatpush1.bf16.msra.mxu0 %v593
      %732 = vmatprep.subr.bf16.mxu0 0
      %733 = vmatpush1.bf16.msra.mxu0 %v594
      %734 = vmatprep.subr.bf16.mxu0 0
      %735 = vmatpush1.bf16.msra.mxu0 %v595
      %736 = vmatprep.subr.bf16.mxu0 0
      %737 = vmatpush1.bf16.msra.mxu0 %v596
      %738 = vmatprep.subr.bf16.mxu0 0
      %739 = vmatpush1.bf16.msra.mxu0 %v597
      %740 = vmatprep.subr.bf16.mxu0 0
      %741 = vmatpush1.bf16.msra.mxu0 %v598
      %742 = vmatprep.subr.bf16.mxu0 0
      %743 = vmatpush1.bf16.msra.mxu0 %v599
      %744 = vmatprep.subr.bf16.mxu0 0
      %745 = vmatpush1.bf16.msra.mxu0 %v600
      %746 = vmatprep.subr.bf16.mxu0 0
      %747 = vmatpush1.bf16.msra.mxu0 %v601
      %748 = vmatprep.subr.bf16.mxu0 0
      %749 = vmatpush1.bf16.msra.mxu0 %v602
      %750 = vmatprep.subr.bf16.mxu0 0
      %751 = vmatpush1.bf16.msra.mxu0 %v603
      %752 = vmatprep.subr.bf16.mxu0 0
      %753 = vmatpush1.bf16.msra.mxu0 %v604
      %754 = vmatprep.subr.bf16.mxu0 0
      %755 = vmatpush1.bf16.msra.mxu0 %v605
      %756 = vmatprep.mubr.bf16.mxu0 %v397
      %757 = vmatmul.mubr.bf16.gmra.mrb[0].mxu0 %v396
      %v758 = vpop.f32.mrb[0].mxu0
      %v759 = vadd.f32 %v694, %v758
      %v760 = vpop.f32.mrb[0].mxu0
      %v761 = vpop.f32.mrb[0].mxu0
      %v762 = vadd.f32 %v697, %v761
      %v763 = vpop.f32.mrb[0].mxu0
      %764 = vmatprep.mubr.bf16.mxu0 %v402
      %765 = vmatmul.mubr.bf16.gmra.mrb[0].mxu0 %v401
      %v766 = vpop.f32.mrb[0].mxu0
      %v767 = vadd.f32 %v702, %v766
      %v768 = vpop.f32.mrb[0].mxu0
      %v769 = vpop.f32.mrb[0].mxu0
      %v770 = vadd.f32 %v705, %v769
      %v771 = vpop.f32.mrb[0].mxu0
      %772 = vmatprep.mubr.bf16.mxu0 %v407
      %773 = vmatmul.mubr.bf16.gmra.mrb[0].mxu0 %v406
      %v774 = vpop.f32.mrb[0].mxu0
      %v775 = vadd.f32 %v710, %v774
      %v776 = vpop.f32.mrb[0].mxu0
      %v777 = vpop.f32.mrb[0].mxu0
      %v778 = vadd.f32 %v713, %v777
      %v779 = vpop.f32.mrb[0].mxu0
      %780 = vmatprep.mubr.bf16.mxu0 %v412
      %781 = vmatmul.mubr.bf16.gmra.mrb[0].mxu0 %v411
      %v782 = vpop.f32.mrb[0].mxu0
      %v783 = vadd.f32 %v718, %v782
      %v784 = vpop.f32.mrb[0].mxu0
      %v785 = vpop.f32.mrb[0].mxu0
      %v786 = vadd.f32 %v721, %v785
      %v787 = vpop.f32.mrb[0].mxu0
      %788 = vdwg.mxu0
      %789 = vmatprep.subr.bf16.mxu0 0
      %790 = vmatpush1.bf16.msra.mxu0 %v606
      %791 = vmatprep.subr.bf16.mxu0 0
      %792 = vmatpush1.bf16.msra.mxu0 %v607
      %793 = vmatprep.subr.bf16.mxu0 0
      %794 = vmatpush1.bf16.msra.mxu0 %v608
      %795 = vmatprep.subr.bf16.mxu0 0
      %796 = vmatpush1.bf16.msra.mxu0 %v609
      %797 = vmatprep.subr.bf16.mxu0 0
      %798 = vmatpush1.bf16.msra.mxu0 0
      %799 = vmatprep.subr.bf16.mxu0 0
      %800 = vmatpush1.bf16.msra.mxu0 0
      %801 = vmatprep.subr.bf16.mxu0 0
      %802 = vmatpush1.bf16.msra.mxu0 0
      %803 = vmatprep.subr.bf16.mxu0 0
      %804 = vmatpush1.bf16.msra.mxu0 0
      %805 = vmatprep.subr.bf16.mxu0 0
      %806 = vmatpush1.bf16.msra.mxu0 0
      %807 = vmatprep.subr.bf16.mxu0 0
      %808 = vmatpush1.bf16.msra.mxu0 0
      %809 = vmatprep.subr.bf16.mxu0 0
      %810 = vmatpush1.bf16.msra.mxu0 0
      %811 = vmatprep.subr.bf16.mxu0 0
      %812 = vmatpush1.bf16.msra.mxu0 0
      %813 = vmatprep.subr.bf16.mxu0 0
      %814 = vmatpush1.bf16.msra.mxu0 0
      %815 = vmatprep.subr.bf16.mxu0 0
      %816 = vmatpush1.bf16.msra.mxu0 0
      %817 = vmatprep.subr.bf16.mxu0 0
      %818 = vmatpush1.bf16.msra.mxu0 0
      %819 = vmatprep.subr.bf16.mxu0 0
      %820 = vmatpush1.bf16.msra.mxu0 0
      %821 = vmatprep.mubr.bf16.mxu0 0
      %822 = vmatmul.mubr.bf16.gmra.mrb[0].mxu0 %v648
      %v823 = vpop.f32.mrb[0].mxu0
      %v824 = vadd.f32 %v759, %v823
      %v825 = vpop.f32.mrb[0].mxu0
      %v826 = vpop.f32.mrb[0].mxu0
      %v827 = vadd.f32 %v762, %v826
      %v828 = vpop.f32.mrb[0].mxu0
      %829 = vmatprep.mubr.bf16.mxu0 0
      %830 = vmatmul.mubr.bf16.gmra.mrb[0].mxu0 %v651
      %v831 = vpop.f32.mrb[0].mxu0
      %v832 = vadd.f32 %v767, %v831
      %v833 = vpop.f32.mrb[0].mxu0
      %v834 = vpop.f32.mrb[0].mxu0
      %v835 = vadd.f32 %v770, %v834
      %v836 = vpop.f32.mrb[0].mxu0
      %837 = vmatprep.mubr.bf16.mxu0 0
      %838 = vmatmul.mubr.bf16.gmra.mrb[0].mxu0 %v654
      %v839 = vpop.f32.mrb[0].mxu0
      %v840 = vadd.f32 %v775, %v839
      %v841 = vpop.f32.mrb[0].mxu0
      %v842 = vpop.f32.mrb[0].mxu0
      %v843 = vadd.f32 %v778, %v842
      %v844 = vpop.f32.mrb[0].mxu0
      %845 = vmatprep.mubr.bf16.mxu0 0
      %846 = vmatmul.mubr.bf16.gmra.mrb[0].mxu0 %v657
      %v847 = vpop.f32.mrb[0].mxu0
      %v848 = vadd.f32 %v783, %v847
      %v849 = vpop.f32.mrb[0].mxu0
      %v850 = vpop.f32.mrb[0].mxu0
      %v851 = vadd.f32 %v786, %v850
      %v852 = vpop.f32.mrb[0].mxu0
      %853 = vdwg.mxu0
      %v854 = vxor.u32 %v824, 2147483648
      %v855 = vxor.u32 %v827, 2147483648
      %v856 = vxor.u32 %v832, 2147483648
      %v857 = vxor.u32 %v835, 2147483648
      %v858 = vxor.u32 %v840, 2147483648
      %v859 = vxor.u32 %v843, 2147483648
      %v860 = vxor.u32 %v848, 2147483648
      %v861 = vxor.u32 %v851, 2147483648
      %v862 = vmul.f32 %v854, 1.442695
      %v863 = vpow.pop %v862
      %v864 = vmul.f32 %v855, 1.442695
      %v865 = vpow.pop %v864
      %v866 = vmul.f32 %v856, 1.442695
      %v867 = vpow.pop %v866
      %v868 = vmul.f32 %v857, 1.442695
      %v869 = vpow.pop %v868
      %v870 = vmul.f32 %v858, 1.442695
      %v871 = vpow.pop %v870
      %v872 = vmul.f32 %v859, 1.442695
      %v873 = vpow.pop %v872
      %v874 = vmul.f32 %v860, 1.442695
      %v875 = vpow.pop %v874
      %v876 = vmul.f32 %v861, 1.442695
      %v877 = vpow.pop %v876
      %v878 = vadd.f32 %v863, 1.0
      %v879 = vadd.f32 %v865, 1.0
      %v880 = vadd.f32 %v867, 1.0
      %v881 = vadd.f32 %v869, 1.0
      %v882 = vadd.f32 %v871, 1.0
      %v883 = vadd.f32 %v873, 1.0
      %v884 = vadd.f32 %v875, 1.0
      %v885 = vadd.f32 %v877, 1.0
      %v886 = vrcp.pop %v878
      %v887 = vmul.f32 1.0, %v886
      %v888 = vrcp.pop %v879
      %v889 = vmul.f32 1.0, %v888
      %v890 = vrcp.pop %v880
      %v891 = vmul.f32 1.0, %v890
      %v892 = vrcp.pop %v881
      %v893 = vmul.f32 1.0, %v892
      %v894 = vrcp.pop %v882
      %v895 = vmul.f32 1.0, %v894
      %v896 = vrcp.pop %v883
      %v897 = vmul.f32 1.0, %v896
      %v898 = vrcp.pop %v884
      %v899 = vmul.f32 1.0, %v898
      %v900 = vrcp.pop %v885
      %v901 = vmul.f32 1.0, %v900
      %v902 = vtanh.pop %v824
      %v903 = vtanh.pop %v827
      %v904 = vtanh.pop %v832
      %v905 = vtanh.pop %v835
      %v906 = vtanh.pop %v840
      %v907 = vtanh.pop %v843
      %v908 = vtanh.pop %v848
      %v909 = vtanh.pop %v851
      %v910 = vld [vmem:[%s218] sm:$0xff]
      %v911 = vld [vmem:[%s218 + $0x8] sm:$0xff]
      %v912 = vld [vmem:[%s218 + $0x10] sm:$0xff]
      %v913 = vld [vmem:[%s218 + $0x18] sm:$0xff]
      %v914 = vld [vmem:[%s218 + $0x20] sm:$0xff]
      %v915 = vld [vmem:[%s218 + $0x28] sm:$0xff]
      %v916 = vld [vmem:[%s218 + $0x30] sm:$0xff]
      %v917 = vld [vmem:[%s218 + $0x38] sm:$0xff]
      %926 = vrot.lane.b32.xlu0 %v910, 32
      %v927 = vpop.permute.xlu0 %926
      %928 = vrot.lane.b32.xlu0 %v911, 32
      %v929 = vpop.permute.xlu0 %928
      %930 = vrot.lane.b32.xlu0 %v912, 32
      %v931 = vpop.permute.xlu0 %930
      %932 = vrot.lane.b32.xlu0 %v913, 32
      %v933 = vpop.permute.xlu0 %932
      %934 = vrot.lane.b32.xlu0 %v914, 32
      %v935 = vpop.permute.xlu0 %934
      %936 = vrot.lane.b32.xlu0 %v915, 32
      %v937 = vpop.permute.xlu0 %936
      %938 = vrot.lane.b32.xlu0 %v916, 32
      %v939 = vpop.permute.xlu0 %938
      %940 = vrot.lane.b32.xlu0 %v917, 32
      %v941 = vpop.permute.xlu0 %940
      %v950 = vmul.f32 %v887, %v927
      %v951 = vmul.f32 %v889, %v929
      %v952 = vmul.f32 %v891, %v931
      %v953 = vmul.f32 %v893, %v933
      %v954 = vmul.f32 %v895, %v935
      %v955 = vmul.f32 %v897, %v937
      %v956 = vmul.f32 %v899, %v939
      %v957 = vmul.f32 %v901, %v941
      %966 = vrot.lane.b32.xlu0 %v902, 64
      %v967 = vpop.permute.xlu0 %966
      %968 = vrot.lane.b32.xlu0 %v903, 64
      %v969 = vpop.permute.xlu0 %968
      %970 = vrot.lane.b32.xlu0 %v904, 64
      %v971 = vpop.permute.xlu0 %970
      %972 = vrot.lane.b32.xlu0 %v905, 64
      %v973 = vpop.permute.xlu0 %972
      %974 = vrot.lane.b32.xlu0 %v906, 64
      %v975 = vpop.permute.xlu0 %974
      %976 = vrot.lane.b32.xlu0 %v907, 64
      %v977 = vpop.permute.xlu0 %976
      %978 = vrot.lane.b32.xlu0 %v908, 64
      %v979 = vpop.permute.xlu0 %978
      %980 = vrot.lane.b32.xlu0 %v909, 64
      %v981 = vpop.permute.xlu0 %980
      %v990 = vmul.f32 %v887, %v967
      %v991 = vmul.f32 %v889, %v969
      %v992 = vmul.f32 %v891, %v971
      %v993 = vmul.f32 %v893, %v973
      %v994 = vmul.f32 %v895, %v975
      %v995 = vmul.f32 %v897, %v977
      %v996 = vmul.f32 %v899, %v979
      %v997 = vmul.f32 %v901, %v981
      %1006 = vrot.lane.b32.xlu0 %v990, 32
      %v1007 = vpop.permute.xlu0 %1006
      %1008 = vrot.lane.b32.xlu0 %v991, 32
      %v1009 = vpop.permute.xlu0 %1008
      %1010 = vrot.lane.b32.xlu0 %v992, 32
      %v1011 = vpop.permute.xlu0 %1010
      %1012 = vrot.lane.b32.xlu0 %v993, 32
      %v1013 = vpop.permute.xlu0 %1012
      %1014 = vrot.lane.b32.xlu0 %v994, 32
      %v1015 = vpop.permute.xlu0 %1014
      %1016 = vrot.lane.b32.xlu0 %v995, 32
      %v1017 = vpop.permute.xlu0 %1016
      %1018 = vrot.lane.b32.xlu0 %v996, 32
      %v1019 = vpop.permute.xlu0 %1018
      %1020 = vrot.lane.b32.xlu0 %v997, 32
      %v1021 = vpop.permute.xlu0 %1020
      %v1030 = vadd.f32 %v950, %v1007
      %v1031 = vadd.f32 %v951, %v1009
      %v1032 = vadd.f32 %v952, %v1011
      %v1033 = vadd.f32 %v953, %v1013
      %v1034 = vadd.f32 %v954, %v1015
      %v1035 = vadd.f32 %v955, %v1017
      %v1036 = vadd.f32 %v956, %v1019
      %v1037 = vadd.f32 %v957, %v1021
      %v1038 = vtanh.pop %v1030
      %v1039 = vtanh.pop %v1031
      %v1040 = vtanh.pop %v1032
      %v1041 = vtanh.pop %v1033
      %v1042 = vtanh.pop %v1034
      %v1043 = vtanh.pop %v1035
      %v1044 = vtanh.pop %v1036
      %v1045 = vtanh.pop %v1037
      %1054 = vrot.lane.b32.xlu0 %v1038, 64
      %v1055 = vpop.permute.xlu0 %1054
      %1056 = vrot.lane.b32.xlu0 %v1039, 64
      %v1057 = vpop.permute.xlu0 %1056
      %1058 = vrot.lane.b32.xlu0 %v1040, 64
      %v1059 = vpop.permute.xlu0 %1058
      %1060 = vrot.lane.b32.xlu0 %v1041, 64
      %v1061 = vpop.permute.xlu0 %1060
      %1062 = vrot.lane.b32.xlu0 %v1042, 64
      %v1063 = vpop.permute.xlu0 %1062
      %1064 = vrot.lane.b32.xlu0 %v1043, 64
      %v1065 = vpop.permute.xlu0 %1064
      %1066 = vrot.lane.b32.xlu0 %v1044, 64
      %v1067 = vpop.permute.xlu0 %1066
      %1068 = vrot.lane.b32.xlu0 %v1045, 64
      %v1069 = vpop.permute.xlu0 %1068
      %v1078 = vmul.f32 %v887, %v1055
      %v1079 = vmul.f32 %v889, %v1057
      %v1080 = vmul.f32 %v891, %v1059
      %v1081 = vmul.f32 %v893, %v1061
      %v1082 = vmul.f32 %v895, %v1063
      %v1083 = vmul.f32 %v897, %v1065
      %v1084 = vmul.f32 %v899, %v1067
      %v1085 = vmul.f32 %v901, %v1069
      %1094 = vrot.lane.b32.xlu0 %v1078, 32
      %v1095 = vpop.permute.xlu0 %1094
      %1096 = vrot.lane.b32.xlu0 %v1079, 32
      %v1097 = vpop.permute.xlu0 %1096
      %1098 = vrot.lane.b32.xlu0 %v1080, 32
      %v1099 = vpop.permute.xlu0 %1098
      %1100 = vrot.lane.b32.xlu0 %v1081, 32
      %v1101 = vpop.permute.xlu0 %1100
      %1102 = vrot.lane.b32.xlu0 %v1082, 32
      %v1103 = vpop.permute.xlu0 %1102
      %1104 = vrot.lane.b32.xlu0 %v1083, 32
      %v1105 = vpop.permute.xlu0 %1104
      %1106 = vrot.lane.b32.xlu0 %v1084, 32
      %v1107 = vpop.permute.xlu0 %1106
      %1108 = vrot.lane.b32.xlu0 %v1085, 32
      %v1109 = vpop.permute.xlu0 %1108
      %vm1118 = vcmask 261120
      %v1119 = vsel %vm1118, %v1095, %v1030
      %v1120 = vsel %vm1118, %v1097, %v1031
      %v1121 = vsel %vm1118, %v1099, %v1032
      %v1122 = vsel %vm1118, %v1101, %v1033
      %v1123 = vsel %vm1118, %v1103, %v1034
      %v1124 = vsel %vm1118, %v1105, %v1035
      %v1125 = vsel %vm1118, %v1107, %v1036
      %v1126 = vsel %vm1118, %v1109, %v1037
      %1127 = vst.msk [vmem:[%s224] sm:$0xff] %vm646, %v1119
      %1128 = vst.msk [vmem:[%s224 + $0x8] sm:$0xff] %vm646, %v1120
      %1129 = vst.msk [vmem:[%s224 + $0x10] sm:$0xff] %vm646, %v1121
      %1130 = vst.msk [vmem:[%s224 + $0x18] sm:$0xff] %vm646, %v1122
      %1131 = vst.msk [vmem:[%s224 + $0x20] sm:$0xff] %vm646, %v1123
      %1132 = vst.msk [vmem:[%s224 + $0x28] sm:$0xff] %vm646, %v1124
      %1133 = vst.msk [vmem:[%s224 + $0x30] sm:$0xff] %vm646, %v1125
      %1134 = vst.msk [vmem:[%s224 + $0x38] sm:$0xff] %vm646, %v1126
      %s1135 = smul.u32 8, %s15
      %p1136 = scmp.lt.s32.totalorder %s1135, 15
      %s1137 = scalar_select %p1136, %s1135, 15
      %s1138 = smul.addr %s1137, 8
      %s1139 = scalar_lea.vmem %s4, %s1138
      // Predicated region
      $region37: #{_lambda_.2} parent=35 // pred_check
        %p1140 = pneg %p127
      $region38: #{_lambda_.2} parent=35 // pred_check_branch
        %1142 = sbr.rel (%p1140) target = $region40
      $region39: #{_lambda_.2} parent=35 // pred_region
        %s1143 = smul.u32 8, %s15
      $region40: #{_lambda_.2} parent=35 // pred_fallthru
        _
    $region36: #{_lambda_.2} parent=5 // pred_fallthru
      _
    %p1144 = scmp.le.s32.totalorder 2, %s10
    // Predicated region
    $region41: #{_lambda_.2} parent=5 // pred_check
      %p1145 = pneg %p1144
    $region42: #{_lambda_.2} parent=5 // pred_check_branch
      %1147 = sbr.rel (%p1145) target = $region44
    $region43: #{_lambda_.2} parent=5 // pred_region
      %s1148 = ssub.s32 %s10, 2
      // Predicated region
      $region45: #{_lambda_.2} parent=43 // pred_check
        %p1149 = pneg %p133
      $region46: #{_lambda_.2} parent=43 // pred_check_branch
        %1151 = sbr.rel (%p1149) target = $region48
      $region47: #{_lambda_.2} parent=43 // pred_region
        %s1152 = smul.u32 8, %s16
        %p1153 = scmp.lt.s32.totalorder %s1152, 15
        %s1154 = scalar_select %p1153, %s1152, 15
        %s1155 = smul.addr %s1154, 8
        %s1156 = scalar_lea.vmem %s4, %s1155
      $region48: #{_lambda_.2} parent=43 // pred_fallthru
        _
    $region44: #{_lambda_.2} parent=5 // pred_fallthru
      _
  $region6: #{_lambda_.2} parent=0 // loop_footer
    %s14 = sadd.s32 1, %s10
  $region7: #{_lambda_.2} parent=0 // loop_footer_branch
    %9 = sbr.rel target = $region3
  $region8: #{_lambda_.2} parent=0 // loop_exit
    _

</llo_original>
